<compile_context>
chip_gen: v7x
topology: tpu7x:2x2x1
jax: 0.10.0
libtpu: 0.0.40
codegen_flags: <defaults>
</compile_context>

<pallas_src>
import jax
import jax.numpy as jnp
from jax.experimental import pallas as pl
from jax.experimental.pallas import tpu as pltpu


# ----------------------------------------------------------------------------
# Module-level constants (baked into jit; zero per-call transfer cost).
# ----------------------------------------------------------------------------
_SCORES = jnp.array([0.9], dtype=jnp.float32)        # (1,)
_PRED_CLASSES = jnp.array([1], dtype=jnp.int32)      # (1,)


# ----------------------------------------------------------------------------
# Kernels (pure scalar / SMEM paths — no VMEM, no vector ops, no DMA waits)
# ----------------------------------------------------------------------------
def _loss_kernel(w_ref, loss_ref):
    # w_ref: (1,1) f32 SMEM, loss_ref: (1,1) f32 SMEM.
    # ||w||_2 of a single-element parameter == |w| (guarded in the wrapper);
    # no XLU reduce, no EUP sqrt.
    loss_ref[0, 0] = jnp.abs(w_ref[0, 0]) * jnp.float32(10.0)


def _boxes_kernel(w_ref, out_ref):
    # w_ref: (1,1) f32 SMEM, out_ref: (1,4) f32 SMEM.
    # Base-box constants baked in as literals; four scalar stores — no masked
    # vst, no vector writeback, no constant-input DMA.
    w = w_ref[0, 0]
    out_ref[0, 0] = jnp.float32(2.5) * w
    out_ref[0, 1] = jnp.float32(2.5) * w
    out_ref[0, 2] = jnp.float32(7.5) * w
    out_ref[0, 3] = jnp.float32(7.5) * w


# ----------------------------------------------------------------------------
# Jitted wrappers (one per execution path — only the needed output is emitted)
# ----------------------------------------------------------------------------
@jax.jit
def _loss_fn(scale_weight):
    loss = pl.pallas_call(
        _loss_kernel,
        out_shape=jax.ShapeDtypeStruct((1, 1), jnp.float32),
        in_specs=[pl.BlockSpec(memory_space=pltpu.SMEM)],
        out_specs=pl.BlockSpec(memory_space=pltpu.SMEM),
    )(scale_weight)
    return loss.reshape(())  # bitcast-reshape, no slice/gather HLO


@jax.jit
def _pred_boxes_fn(scale_weight):
    return pl.pallas_call(
        _boxes_kernel,
        out_shape=jax.ShapeDtypeStruct((1, 4), jnp.float32),
        in_specs=[pl.BlockSpec(memory_space=pltpu.SMEM)],
        out_specs=pl.BlockSpec(memory_space=pltpu.SMEM),
    )(scale_weight)


def meta_arch_forward(scale_weight, inputs=None, training=True):
    """Mirrors MetaArchForTestSingleValue.forward; `inputs` is unused there."""
    del inputs
    # |w| == ||w||_2 only because the parameter holds exactly one element.
    assert scale_weight.size == 1, "scale_weight must hold exactly one element"

    if training:
        # ret = {'loss': self.scale_weight.norm() * 10.0}
        return {"loss": _loss_fn(scale_weight)}

    # Inference: Instances((10,10)) with pred_boxes / scores / pred_classes.
    # TODO(synk): detectron2 `Instances` / `Boxes` containers have no Pallas
    # equivalent; represented as a plain dict of arrays.
    instance = {
        "image_size": (10, 10),
        "pred_boxes": _pred_boxes_fn(scale_weight),   # (1, 4)
        "scores": _SCORES,                            # (1,)
        "pred_classes": _PRED_CLASSES,                # (1,)
    }
    return [{"instances": instance}]


if __name__ == "__main__":
    key = jax.random.PRNGKey(0)

    # Deterministic parameter init, exactly as __init__: Parameter([1.0]).
    scale_weight = jnp.ones((1, 1), dtype=jnp.float32)

    # Dummy "inputs" (the module's forward never reads them).
    dummy_inputs = jax.random.normal(key, (2, 4), dtype=jnp.float32)

    # Training path.
    train_out = meta_arch_forward(scale_weight, dummy_inputs, training=True)
    loss = jax.block_until_ready(train_out["loss"])

    # Inference path.
    infer_out = meta_arch_forward(scale_weight, dummy_inputs, training=False)
    pred_boxes = jax.block_until_ready(infer_out[0]["instances"]["pred_boxes"])

    # Sanity checks against the PyTorch semantics.
    assert abs(float(loss) - 10.0) < 1e-5, f"loss mismatch: {loss}"
    expected_boxes = jnp.array([[2.5, 2.5, 7.5, 7.5]], dtype=jnp.float32)
    assert jnp.allclose(pred_boxes, expected_boxes, atol=1e-6), pred_boxes

    print("KERNEL_OK")
</pallas_src>

<mosaic_0001>
module attributes {stable_mosaic.version = 11 : i64} {
  func.func @_loss_kernel(%arg0: memref<1x1xf32, #tpu.memory_space<smem>>, %arg1: memref<1x1xf32, #tpu.memory_space<smem>>) attributes {dimension_semantics = [], scalar_prefetch = 0 : i64, scratch_operands = 0 : i64, tpu.core_type = #tpu.core_type<tc>} {
    %c0 = arith.constant 0 : index
    %c0_0 = arith.constant 0 : index
    %0 = memref.load %arg0[%c0, %c0_0] : memref<1x1xf32, #tpu.memory_space<smem>>
    %1 = math.absf %0 : f32
    %cst = arith.constant 1.000000e+01 : f32
    %2 = arith.mulf %1, %cst : f32
    %c0_1 = arith.constant 0 : index
    %c0_2 = arith.constant 0 : index
    %3 = memref.load %arg1[%c0_1, %c0_2] : memref<1x1xf32, #tpu.memory_space<smem>>
    memref.store %2, %arg1[%c0_1, %c0_2] : memref<1x1xf32, #tpu.memory_space<smem>>
    return
  }
}

</mosaic_0001>

<llo_original>
// kernel: _loss_fn.1
$region0: #{_loss_fn.1}
  #allocation0 [shape = 'u32[]', space=smem, size = 0x4, offset = 0x4, fixed_abs, tag = 'smem constant byte address 0x4 - core index']
  #allocation1 [shape = 'u32[144,128]{1,0:T(1,128)}', space=vmem, size = 0x12000, scoped, tag = 'internal scratch']
  #allocation2 [shape = 'f32[1,1]{1,0:T(1,128)S(6)}', space=smem, size = 0x200, scoped, tag = 'scoped memory for _loss_fn.1']
  %s0 = inlined_call_operand.<no memory space> [shape: f32[1,1], index: 0, kind: input, shape index: {}]
  %s1 = inlined_call_operand.hbm [shape: f32[1,1], index: 1, kind: output, shape index: {}]
  %s2 = sld [smem:[#allocation0]]
  $region14: #{_loss_fn.1} parent=0
    _
  %s4 = ssub.s32 1, %s2
  %s5 = scalar_select 0, %s4, %s2
  %6 = sst [smem:[#allocation2]] %s0
  $region1: #{_loss_fn.1} parent=0
    #allocation3 [shape = 'u8[512]{0}', space=smem, size = 0x200, scoped, tag = 'output window, operand 0, single buffered']
    #allocation4 [shape = 's32[1]{0}', space=sflag, size = 0x4, scoped, tag = 'scoped memory for _loss_fn.1']
    %7 = vsyncpa [#allocation4], 0
    // Predicated region
    $region2: #{_loss_fn.1} parent=1 // pred_check
      _
    $region3: #{_loss_fn.1} parent=1 // pred_check_branch
      %9 = sbr.rel (0) target = $region5
    $region4: #{_loss_fn.1} parent=1 // pred_region
      _
    $region5: #{_loss_fn.1} parent=1 // pred_fallthru
      _
    %s10 = sld [smem:[#allocation2]]
    %s11 = sand.u32 2147483647, %s10
    %s12 = smul.f32 %s11, 10.0
    %s13 = scalar_lea.smem [#allocation3], 0
    %14 = sst [smem:[%s13]] %s12
    // Predicated region
    $region6: #{_loss_fn.1} parent=1 // pred_check
      _
    $region7: #{_loss_fn.1} parent=1 // pred_check_branch
      %16 = sbr.rel (0) target = $region9
    $region8: #{_loss_fn.1} parent=1 // pred_region
      %s18 = ssub.s32 16, 16
      %19 = vsyncadd [#allocation4], %s18
      %22 = dma.smem_to_hbm [#allocation3], 16, %s1, [#allocation4]
    $region9: #{_loss_fn.1} parent=1 // pred_fallthru
      _
    // Predicated region
    $region10: #{_loss_fn.1} parent=1 // pred_check
      _
    $region11: #{_loss_fn.1} parent=1 // pred_check_branch
      %24 = sbr.rel (0) target = $region13
    $region12: #{_loss_fn.1} parent=1 // pred_region
      %25 = dma.done [#allocation4], 16
    $region13: #{_loss_fn.1} parent=1 // pred_fallthru
      _
    %26 = sfence
    %27 = vsyncpa [#allocation4], 1

</llo_original>
